<compile_context>
chip_gen: v7x
topology: tpu7x:2x2x1
jax: 0.10.0
libtpu: 0.0.40
codegen_flags: <defaults>
</compile_context>

<pallas_src>
import jax
import jax.numpy as jnp
from jax.experimental import pallas as pl
from jax.experimental.pallas import tpu as pltpu


def _round_up(x, m):
    return (x + m - 1) // m * m


# ----------------------------------------------------------------------------
# Fused kernel.  Single invocation, everything VMEM-resident.
#   x_ref     : (2B, Kp)   bf16   rows [0:B] = aug1, rows [B:2B] = aug2
#   vis_w_ref : (Kp, Pvis) bf16
#   vis_b_ref : (1, Pvis)  f32
#   w1_ref    : (Pvis, Pmlp) bf16      vecs1_ref: (3, Pmlp) f32 = [b1, g1, be1]
#   w2_ref    : (Pmlp, Pmlp) bf16      vecs2_ref: (3, Pmlp) f32 = [b2, g2, be2]
#   w3_ref    : (Pmlp, Pemb) bf16      b3_ref   : (1, Pemb) f32
#   o_ref     : (2B, Pemb) f32
# ----------------------------------------------------------------------------
def _simclr_kernel(x_ref, vis_w_ref, vis_b_ref, w1_ref, vecs1_ref,
                   w2_ref, vecs2_ref, w3_ref, b3_ref, o_ref):
    eps = jnp.float32(1e-5)
    B = x_ref.shape[0] // 2
    bf16 = jnp.bfloat16

    def bn_relu(z, g, be):
        # Train-mode BatchNorm: biased batch stats, computed per augmentation
        # (per row half), then shared affine + ReLU.
        def norm(zz):
            mu = jnp.mean(zz, axis=0, keepdims=True)
            var = jnp.mean(jnp.square(zz - mu), axis=0, keepdims=True)
            return (zz - mu) * jax.lax.rsqrt(var + eps)

        zn = jnp.concatenate([norm(z[:B]), norm(z[B:])], axis=0)
        return jnp.maximum(zn * g + be, 0.0)

    # Vision backbone: single Linear over flattened pixels (both augs, M=2B).
    h = jnp.dot(x_ref[...], vis_w_ref[...],
                preferred_element_type=jnp.float32) + vis_b_ref[...]

    # SSL projection head: Linear -> BN -> ReLU -> Linear -> BN -> ReLU -> Linear.
    z1 = jnp.dot(h.astype(bf16), w1_ref[...],
                 preferred_element_type=jnp.float32) + vecs1_ref[0:1, :]
    a1 = bn_relu(z1, vecs1_ref[1:2, :], vecs1_ref[2:3, :])

    z2 = jnp.dot(a1.astype(bf16), w2_ref[...],
                 preferred_element_type=jnp.float32) + vecs2_ref[0:1, :]
    a2 = bn_relu(z2, vecs2_ref[1:2, :], vecs2_ref[2:3, :])

    o_ref[...] = jnp.dot(a2.astype(bf16), w3_ref[...],
                         preferred_element_type=jnp.float32) + b3_ref[...]


def simclr_forward(packed, aug1, aug2):
    B = aug1.shape[0]
    K = aug1[0].size
    Kp = packed["vis_w_p"].shape[0]
    Pemb = packed["w3_p"].shape[1]
    E = packed["ssl_emb_dim"]

    # One fused XLA op: row-major flatten (NCHW, same as torch.flatten),
    # merge both augs along batch, cast to bf16.  No extra f32 stack/pad pass.
    x = jnp.concatenate([aug1.reshape(B, K), aug2.reshape(B, K)],
                        axis=0).astype(jnp.bfloat16)
    if Kp != K:
        x = jnp.pad(x, ((0, 0), (0, Kp - K)))

    vmem_spec = pl.BlockSpec(memory_space=pltpu.MemorySpace.VMEM)

    out = pl.pallas_call(
        _simclr_kernel,
        out_shape=jax.ShapeDtypeStruct((2 * B, Pemb), jnp.float32),
        in_specs=[vmem_spec] * 9,
        out_specs=vmem_spec,
    )(x, packed["vis_w_p"], packed["vis_b_p"],
      packed["w1_p"], packed["vecs1"],
      packed["w2_p"], packed["vecs2"],
      packed["w3_p"], packed["b3_p"])

    # Padded embedding lanes are exact zeros; slice them off outside.
    return {"aug1_embed": out[:B, :E], "aug2_embed": out[B:, :E]}


# ----------------------------------------------------------------------------
# Parameters.  raw = unpadded f32 (matches SIMCLR.__init__ shapes);
# packed = kernel operands, each feature dim padded to its own multiple of 128,
# weights cast to bf16, small vectors kept f32 and stacked per width.
# ----------------------------------------------------------------------------
def init_raw_params(key, in_dim, vision_width, ssl_mlp_dim, ssl_emb_dim):
    ks = jax.random.split(key, 4)

    def lin(k, d_in, d_out):
        bound = 1.0 / (d_in ** 0.5)
        kw, kb = jax.random.split(k)
        w = jax.random.uniform(kw, (d_in, d_out), jnp.float32, -bound, bound)
        b = jax.random.uniform(kb, (d_out,), jnp.float32, -bound, bound)
        return w, b

    vis_w, vis_b = lin(ks[0], in_dim, vision_width)
    w1, b1 = lin(ks[1], vision_width, ssl_mlp_dim)
    w2, b2 = lin(ks[2], ssl_mlp_dim, ssl_mlp_dim)
    w3, b3 = lin(ks[3], ssl_mlp_dim, ssl_emb_dim)
    return {
        "vis_w": vis_w, "vis_b": vis_b,
        "w1": w1, "b1": b1,
        "g1": jnp.ones((ssl_mlp_dim,), jnp.float32),
        "be1": jnp.zeros((ssl_mlp_dim,), jnp.float32),
        "w2": w2, "b2": b2,
        "g2": jnp.ones((ssl_mlp_dim,), jnp.float32),
        "be2": jnp.zeros((ssl_mlp_dim,), jnp.float32),
        "w3": w3, "b3": b3,
    }


def pack_params(raw):
    in_dim, vw = raw["vis_w"].shape
    mdim = raw["w1"].shape[1]
    edim = raw["w3"].shape[1]
    Kp = _round_up(in_dim, 128)
    Pvis = _round_up(vw, 128)
    Pmlp = _round_up(mdim, 128)
    Pemb = _round_up(edim, 128)

    def pad_mat(w, rows, cols):
        return jnp.pad(w, ((0, rows - w.shape[0]),
                           (0, cols - w.shape[1]))).astype(jnp.bfloat16)

    def pad_vec(v, width):
        # NOTE: gamma is zero-padded too (not ones) — see padding invariant.
        return jnp.pad(v, (0, width - v.shape[0]))

    return {
        "vis_w_p": pad_mat(raw["vis_w"], Kp, Pvis),
        "vis_b_p": pad_vec(raw["vis_b"], Pvis)[None, :],
        "w1_p": pad_mat(raw["w1"], Pvis, Pmlp),
        "vecs1": jnp.stack([pad_vec(raw["b1"], Pmlp),
                            pad_vec(raw["g1"], Pmlp),
                            pad_vec(raw["be1"], Pmlp)], axis=0),
        "w2_p": pad_mat(raw["w2"], Pmlp, Pmlp),
        "vecs2": jnp.stack([pad_vec(raw["b2"], Pmlp),
                            pad_vec(raw["g2"], Pmlp),
                            pad_vec(raw["be2"], Pmlp)], axis=0),
        "w3_p": pad_mat(raw["w3"], Pmlp, Pemb),
        "b3_p": pad_vec(raw["b3"], Pemb)[None, :],
        "ssl_emb_dim": edim,
    }


# Pure-JAX reference (unpadded, same bf16-matmul / f32-accumulate recipe) for a
# correctness sanity check.
def _reference(raw, aug1, aug2):
    eps = jnp.float32(1e-5)
    bf16 = jnp.bfloat16

    def mm(a, w):
        return jnp.dot(a.astype(bf16), w.astype(bf16),
                       preferred_element_type=jnp.float32)

    def bn_relu(z, g, be):
        mu = jnp.mean(z, axis=0, keepdims=True)
        var = jnp.mean(jnp.square(z - mu), axis=0, keepdims=True)
        zn = (z - mu) * jax.lax.rsqrt(var + eps)
        return jnp.maximum(zn * g + be, 0.0)

    def head(h):
        a1 = bn_relu(mm(h, raw["w1"]) + raw["b1"], raw["g1"], raw["be1"])
        a2 = bn_relu(mm(a1, raw["w2"]) + raw["b2"], raw["g2"], raw["be2"])
        return mm(a2, raw["w3"]) + raw["b3"]

    B = aug1.shape[0]
    h1 = mm(aug1.reshape(B, -1), raw["vis_w"]) + raw["vis_b"]
    h2 = mm(aug2.reshape(B, -1), raw["vis_w"]) + raw["vis_b"]
    return {"aug1_embed": head(h1), "aug2_embed": head(h2)}


if __name__ == "__main__":
    B, C, H, W = 8, 4, 16, 16          # NCHW like PyTorch
    vision_width, ssl_mlp_dim, ssl_emb_dim = 32, 64, 16

    key = jax.random.PRNGKey(0)
    k_p, k_a1, k_a2 = jax.random.split(key, 3)
    raw = init_raw_params(k_p, C * H * W, vision_width, ssl_mlp_dim, ssl_emb_dim)
    packed = pack_params(raw)
    aug1 = jax.random.normal(k_a1, (B, C, H, W), jnp.float32)
    aug2 = jax.random.normal(k_a2, (B, C, H, W), jnp.float32)

    out = jax.block_until_ready(simclr_forward(packed, aug1, aug2))
    ref = _reference(raw, aug1, aug2)

    assert out["aug1_embed"].shape == (B, ssl_emb_dim)
    assert out["aug2_embed"].shape == (B, ssl_emb_dim)
    assert jnp.allclose(out["aug1_embed"], ref["aug1_embed"], atol=2e-3, rtol=2e-3)
    assert jnp.allclose(out["aug2_embed"], ref["aug2_embed"], atol=2e-3, rtol=2e-3)

    print("KERNEL_OK")
</pallas_src>

<mosaic_0001>
module attributes {stable_mosaic.version = 11 : i64} {
  func.func @_simclr_kernel(%arg0: memref<16x1024xbf16, #tpu.memory_space<vmem>>, %arg1: memref<1024x128xbf16, #tpu.memory_space<vmem>>, %arg2: memref<1x128xf32, #tpu.memory_space<vmem>>, %arg3: memref<128x128xbf16, #tpu.memory_space<vmem>>, %arg4: memref<3x128xf32, #tpu.memory_space<vmem>>, %arg5: memref<128x128xbf16, #tpu.memory_space<vmem>>, %arg6: memref<3x128xf32, #tpu.memory_space<vmem>>, %arg7: memref<128x128xbf16, #tpu.memory_space<vmem>>, %arg8: memref<1x128xf32, #tpu.memory_space<vmem>>, %arg9: memref<16x128xf32, #tpu.memory_space<vmem>>) attributes {dimension_semantics = [], scalar_prefetch = 0 : i64, scratch_operands = 0 : i64, tpu.core_type = #tpu.core_type<tc>} {
    %c0 = arith.constant 0 : index
    %c0_0 = arith.constant 0 : index
    %0 = vector.load %arg0[%c0, %c0_0] : memref<16x1024xbf16, #tpu.memory_space<vmem>>, vector<16x1024xbf16>
    %c0_1 = arith.constant 0 : index
    %c0_2 = arith.constant 0 : index
    %1 = vector.load %arg1[%c0_1, %c0_2] : memref<1024x128xbf16, #tpu.memory_space<vmem>>, vector<1024x128xbf16>
    %cst = arith.constant dense<0.000000e+00> : vector<16x128xf32>
    %2 = tpu.matmul %0, %1, %cst {dimension_numbers = #tpu.dot_dimension_numbers<[1], [0], [0], [1], [0, 0, 1, 1], [], []>} : vector<16x1024xbf16>, vector<1024x128xbf16>, vector<16x128xf32> -> vector<16x128xf32>
    %c0_3 = arith.constant 0 : index
    %c0_4 = arith.constant 0 : index
    %3 = vector.load %arg2[%c0_3, %c0_4] : memref<1x128xf32, #tpu.memory_space<vmem>>, vector<1x128xf32>
    %4 = vector.broadcast %3 : vector<1x128xf32> to vector<16x128xf32>
    %5 = arith.addf %2, %4 : vector<16x128xf32>
    %6 = arith.truncf %5 : vector<16x128xf32> to vector<16x128xbf16>
    %c0_5 = arith.constant 0 : index
    %c0_6 = arith.constant 0 : index
    %7 = vector.load %arg3[%c0_5, %c0_6] : memref<128x128xbf16, #tpu.memory_space<vmem>>, vector<128x128xbf16>
    %cst_7 = arith.constant dense<0.000000e+00> : vector<16x128xf32>
    %8 = tpu.matmul %6, %7, %cst_7 {dimension_numbers = #tpu.dot_dimension_numbers<[1], [0], [0], [1], [0, 0, 1, 1], [], []>} : vector<16x128xbf16>, vector<128x128xbf16>, vector<16x128xf32> -> vector<16x128xf32>
    %c0_8 = arith.constant 0 : index
    %c0_9 = arith.constant 0 : index
    %9 = vector.load %arg4[%c0_8, %c0_9] : memref<3x128xf32, #tpu.memory_space<vmem>>, vector<1x128xf32>
    %10 = vector.broadcast %9 : vector<1x128xf32> to vector<16x128xf32>
    %11 = arith.addf %8, %10 : vector<16x128xf32>
    %c1 = arith.constant 1 : index
    %c0_10 = arith.constant 0 : index
    %12 = vector.load %arg4[%c1, %c0_10] : memref<3x128xf32, #tpu.memory_space<vmem>>, vector<1x128xf32>
    %c2 = arith.constant 2 : index
    %c0_11 = arith.constant 0 : index
    %13 = vector.load %arg4[%c2, %c0_11] : memref<3x128xf32, #tpu.memory_space<vmem>>, vector<1x128xf32>
    %14 = vector.extract_strided_slice %11 {offsets = [0, 0], sizes = [8, 128], strides = [1, 1]} : vector<16x128xf32> to vector<8x128xf32>
    %cst_12 = arith.constant dense<0.000000e+00> : vector<128xf32>
    %15 = vector.multi_reduction <add>, %14, %cst_12 [0] : vector<8x128xf32> to vector<128xf32>
    %16 = vector.shape_cast %15 : vector<128xf32> to vector<1x128xf32>
    %cst_13 = arith.constant 8.000000e+00 : f32
    %17 = vector.broadcast %cst_13 : f32 to vector<1x128xf32>
    %18 = arith.divf %16, %17 : vector<1x128xf32>
    %19 = vector.broadcast %18 : vector<1x128xf32> to vector<8x128xf32>
    %20 = arith.subf %14, %19 : vector<8x128xf32>
    %21 = arith.mulf %20, %20 : vector<8x128xf32>
    %cst_14 = arith.constant dense<0.000000e+00> : vector<128xf32>
    %22 = vector.multi_reduction <add>, %21, %cst_14 [0] : vector<8x128xf32> to vector<128xf32>
    %23 = vector.shape_cast %22 : vector<128xf32> to vector<1x128xf32>
    %cst_15 = arith.constant 8.000000e+00 : f32
    %24 = vector.broadcast %cst_15 : f32 to vector<1x128xf32>
    %25 = arith.divf %23, %24 : vector<1x128xf32>
    %26 = vector.broadcast %18 : vector<1x128xf32> to vector<8x128xf32>
    %27 = arith.subf %14, %26 : vector<8x128xf32>
    %cst_16 = arith.constant 9.99999974E-6 : f32
    %28 = vector.broadcast %cst_16 : f32 to vector<1x128xf32>
    %29 = arith.addf %25, %28 : vector<1x128xf32>
    %30 = math.rsqrt %29 : vector<1x128xf32>
    %31 = vector.broadcast %30 : vector<1x128xf32> to vector<8x128xf32>
    %32 = arith.mulf %27, %31 : vector<8x128xf32>
    %33 = vector.extract_strided_slice %11 {offsets = [8, 0], sizes = [8, 128], strides = [1, 1]} : vector<16x128xf32> to vector<8x128xf32>
    %cst_17 = arith.constant dense<0.000000e+00> : vector<128xf32>
    %34 = vector.multi_reduction <add>, %33, %cst_17 [0] : vector<8x128xf32> to vector<128xf32>
    %35 = vector.shape_cast %34 : vector<128xf32> to vector<1x128xf32>
    %cst_18 = arith.constant 8.000000e+00 : f32
    %36 = vector.broadcast %cst_18 : f32 to vector<1x128xf32>
    %37 = arith.divf %35, %36 : vector<1x128xf32>
    %38 = vector.broadcast %37 : vector<1x128xf32> to vector<8x128xf32>
    %39 = arith.subf %33, %38 : vector<8x128xf32>
    %40 = arith.mulf %39, %39 : vector<8x128xf32>
    %cst_19 = arith.constant dense<0.000000e+00> : vector<128xf32>
    %41 = vector.multi_reduction <add>, %40, %cst_19 [0] : vector<8x128xf32> to vector<128xf32>
    %42 = vector.shape_cast %41 : vector<128xf32> to vector<1x128xf32>
    %cst_20 = arith.constant 8.000000e+00 : f32
    %43 = vector.broadcast %cst_20 : f32 to vector<1x128xf32>
    %44 = arith.divf %42, %43 : vector<1x128xf32>
    %45 = vector.broadcast %37 : vector<1x128xf32> to vector<8x128xf32>
    %46 = arith.subf %33, %45 : vector<8x128xf32>
    %cst_21 = arith.constant 9.99999974E-6 : f32
    %47 = vector.broadcast %cst_21 : f32 to vector<1x128xf32>
    %48 = arith.addf %44, %47 : vector<1x128xf32>
    %49 = math.rsqrt %48 : vector<1x128xf32>
    %50 = vector.broadcast %49 : vector<1x128xf32> to vector<8x128xf32>
    %51 = arith.mulf %46, %50 : vector<8x128xf32>
    %52 = tpu.concatenate %32, %51 in 0 : vector<8x128xf32>, vector<8x128xf32> -> vector<16x128xf32>
    %53 = vector.broadcast %12 : vector<1x128xf32> to vector<16x128xf32>
    %54 = arith.mulf %52, %53 : vector<16x128xf32>
    %55 = vector.broadcast %13 : vector<1x128xf32> to vector<16x128xf32>
    %56 = arith.addf %54, %55 : vector<16x128xf32>
    %cst_22 = arith.constant 0.000000e+00 : f32
    %57 = vector.broadcast %cst_22 : f32 to vector<16x128xf32>
    %58 = arith.maximumf %56, %57 : vector<16x128xf32>
    %59 = arith.truncf %58 : vector<16x128xf32> to vector<16x128xbf16>
    %c0_23 = arith.constant 0 : index
    %c0_24 = arith.constant 0 : index
    %60 = vector.load %arg5[%c0_23, %c0_24] : memref<128x128xbf16, #tpu.memory_space<vmem>>, vector<128x128xbf16>
    %cst_25 = arith.constant dense<0.000000e+00> : vector<16x128xf32>
    %61 = tpu.matmul %59, %60, %cst_25 {dimension_numbers = #tpu.dot_dimension_numbers<[1], [0], [0], [1], [0, 0, 1, 1], [], []>} : vector<16x128xbf16>, vector<128x128xbf16>, vector<16x128xf32> -> vector<16x128xf32>
    %c0_26 = arith.constant 0 : index
    %c0_27 = arith.constant 0 : index
    %62 = vector.load %arg6[%c0_26, %c0_27] : memref<3x128xf32, #tpu.memory_space<vmem>>, vector<1x128xf32>
    %63 = vector.broadcast %62 : vector<1x128xf32> to vector<16x128xf32>
    %64 = arith.addf %61, %63 : vector<16x128xf32>
    %c1_28 = arith.constant 1 : index
    %c0_29 = arith.constant 0 : index
    %65 = vector.load %arg6[%c1_28, %c0_29] : memref<3x128xf32, #tpu.memory_space<vmem>>, vector<1x128xf32>
    %c2_30 = arith.constant 2 : index
    %c0_31 = arith.constant 0 : index
    %66 = vector.load %arg6[%c2_30, %c0_31] : memref<3x128xf32, #tpu.memory_space<vmem>>, vector<1x128xf32>
    %67 = vector.extract_strided_slice %64 {offsets = [0, 0], sizes = [8, 128], strides = [1, 1]} : vector<16x128xf32> to vector<8x128xf32>
    %cst_32 = arith.constant dense<0.000000e+00> : vector<128xf32>
    %68 = vector.multi_reduction <add>, %67, %cst_32 [0] : vector<8x128xf32> to vector<128xf32>
    %69 = vector.shape_cast %68 : vector<128xf32> to vector<1x128xf32>
    %cst_33 = arith.constant 8.000000e+00 : f32
    %70 = vector.broadcast %cst_33 : f32 to vector<1x128xf32>
    %71 = arith.divf %69, %70 : vector<1x128xf32>
    %72 = vector.broadcast %71 : vector<1x128xf32> to vector<8x128xf32>
    %73 = arith.subf %67, %72 : vector<8x128xf32>
    %74 = arith.mulf %73, %73 : vector<8x128xf32>
    %cst_34 = arith.constant dense<0.000000e+00> : vector<128xf32>
    %75 = vector.multi_reduction <add>, %74, %cst_34 [0] : vector<8x128xf32> to vector<128xf32>
    %76 = vector.shape_cast %75 : vector<128xf32> to vector<1x128xf32>
    %cst_35 = arith.constant 8.000000e+00 : f32
    %77 = vector.broadcast %cst_35 : f32 to vector<1x128xf32>
    %78 = arith.divf %76, %77 : vector<1x128xf32>
    %79 = vector.broadcast %71 : vector<1x128xf32> to vector<8x128xf32>
    %80 = arith.subf %67, %79 : vector<8x128xf32>
    %cst_36 = arith.constant 9.99999974E-6 : f32
    %81 = vector.broadcast %cst_36 : f32 to vector<1x128xf32>
    %82 = arith.addf %78, %81 : vector<1x128xf32>
    %83 = math.rsqrt %82 : vector<1x128xf32>
    %84 = vector.broadcast %83 : vector<1x128xf32> to vector<8x128xf32>
    %85 = arith.mulf %80, %84 : vector<8x128xf32>
    %86 = vector.extract_strided_slice %64 {offsets = [8, 0], sizes = [8, 128], strides = [1, 1]} : vector<16x128xf32> to vector<8x128xf32>
    %cst_37 = arith.constant dense<0.000000e+00> : vector<128xf32>
    %87 = vector.multi_reduction <add>, %86, %cst_37 [0] : vector<8x128xf32> to vector<128xf32>
    %88 = vector.shape_cast %87 : vector<128xf32> to vector<1x128xf32>
    %cst_38 = arith.constant 8.000000e+00 : f32
    %89 = vector.broadcast %cst_38 : f32 to vector<1x128xf32>
    %90 = arith.divf %88, %89 : vector<1x128xf32>
    %91 = vector.broadcast %90 : vector<1x128xf32> to vector<8x128xf32>
    %92 = arith.subf %86, %91 : vector<8x128xf32>
    %93 = arith.mulf %92, %92 : vector<8x128xf32>
    %cst_39 = arith.constant dense<0.000000e+00> : vector<128xf32>
    %94 = vector.multi_reduction <add>, %93, %cst_39 [0] : vector<8x128xf32> to vector<128xf32>
    %95 = vector.shape_cast %94 : vector<128xf32> to vector<1x128xf32>
    %cst_40 = arith.constant 8.000000e+00 : f32
    %96 = vector.broadcast %cst_40 : f32 to vector<1x128xf32>
    %97 = arith.divf %95, %96 : vector<1x128xf32>
    %98 = vector.broadcast %90 : vector<1x128xf32> to vector<8x128xf32>
    %99 = arith.subf %86, %98 : vector<8x128xf32>
    %cst_41 = arith.constant 9.99999974E-6 : f32
    %100 = vector.broadcast %cst_41 : f32 to vector<1x128xf32>
    %101 = arith.addf %97, %100 : vector<1x128xf32>
    %102 = math.rsqrt %101 : vector<1x128xf32>
    %103 = vector.broadcast %102 : vector<1x128xf32> to vector<8x128xf32>
    %104 = arith.mulf %99, %103 : vector<8x128xf32>
    %105 = tpu.concatenate %85, %104 in 0 : vector<8x128xf32>, vector<8x128xf32> -> vector<16x128xf32>
    %106 = vector.broadcast %65 : vector<1x128xf32> to vector<16x128xf32>
    %107 = arith.mulf %105, %106 : vector<16x128xf32>
    %108 = vector.broadcast %66 : vector<1x128xf32> to vector<16x128xf32>
    %109 = arith.addf %107, %108 : vector<16x128xf32>
    %cst_42 = arith.constant 0.000000e+00 : f32
    %110 = vector.broadcast %cst_42 : f32 to vector<16x128xf32>
    %111 = arith.maximumf %109, %110 : vector<16x128xf32>
    %112 = arith.truncf %111 : vector<16x128xf32> to vector<16x128xbf16>
    %c0_43 = arith.constant 0 : index
    %c0_44 = arith.constant 0 : index
    %113 = vector.load %arg7[%c0_43, %c0_44] : memref<128x128xbf16, #tpu.memory_space<vmem>>, vector<128x128xbf16>
    %cst_45 = arith.constant dense<0.000000e+00> : vector<16x128xf32>
    %114 = tpu.matmul %112, %113, %cst_45 {dimension_numbers = #tpu.dot_dimension_numbers<[1], [0], [0], [1], [0, 0, 1, 1], [], []>} : vector<16x128xbf16>, vector<128x128xbf16>, vector<16x128xf32> -> vector<16x128xf32>
    %c0_46 = arith.constant 0 : index
    %c0_47 = arith.constant 0 : index
    %115 = vector.load %arg8[%c0_46, %c0_47] : memref<1x128xf32, #tpu.memory_space<vmem>>, vector<1x128xf32>
    %116 = vector.broadcast %115 : vector<1x128xf32> to vector<16x128xf32>
    %117 = arith.addf %114, %116 : vector<16x128xf32>
    %c0_48 = arith.constant 0 : index
    %c0_49 = arith.constant 0 : index
    %118 = vector.load %arg9[%c0_48, %c0_49] : memref<16x128xf32, #tpu.memory_space<vmem>>, vector<16x128xf32>
    tpu.vector_store %arg9[%c0_48, %c0_49], %117 {strides = array<i32>} : memref<16x128xf32, #tpu.memory_space<vmem>>, vector<16x128xf32>,
    return
  }
}

</mosaic_0001>

<llo_original>
// kernel: tpu_custom_call.1
$region0: #{tpu_custom_call.1}
  #allocation0 [shape = 'u32[]', space=smem, size = 0x4, offset = 0x4, fixed_abs, tag = 'smem constant byte address 0x4 - core index']
  #allocation1 [shape = 'u32[144,128]{1,0:T(1,128)}', space=vmem, size = 0x12000, scoped, tag = 'internal scratch']
  %s0 = inlined_call_operand.hbm [shape: bf16[16,1024], index: 0, kind: input, shape index: {}]
  %s1 = inlined_call_operand.hbm [shape: bf16[1024,128], index: 1, kind: input, shape index: {}]
  %s2 = inlined_call_operand.vmem [shape: f32[1,128], index: 2, kind: input, shape index: {}]
  %s3 = inlined_call_operand.hbm [shape: bf16[128,128], index: 3, kind: input, shape index: {}]
  %s4 = inlined_call_operand.vmem [shape: f32[3,128], index: 4, kind: input, shape index: {}]
  %s5 = inlined_call_operand.hbm [shape: bf16[128,128], index: 5, kind: input, shape index: {}]
  %s6 = inlined_call_operand.vmem [shape: f32[3,128], index: 6, kind: input, shape index: {}]
  %s7 = inlined_call_operand.hbm [shape: bf16[128,128], index: 7, kind: input, shape index: {}]
  %s8 = inlined_call_operand.vmem [shape: f32[1,128], index: 8, kind: input, shape index: {}]
  %s9 = inlined_call_operand.hbm [shape: f32[16,128], index: 9, kind: output, shape index: {}]
  %s10 = sld [smem:[#allocation0]]
  $region66: #{tpu_custom_call.1} parent=0
    _
  %s12 = ssub.s32 1, %s10
  %s13 = scalar_select 0, %s12, %s10
  $region1: #{tpu_custom_call.1} parent=0
    #allocation2 [shape = 'u8[32768]{0}', space=vmem, size = 0x8000, scoped, tag = 'input window, operand 0, single buffered']
    #allocation3 [shape = 's32[1]{0}', space=sflag, size = 0x4, scoped, tag = 'scoped memory for tpu_custom_call.1']
    #allocation4 [shape = 's32[1]{0}', space=sflag, size = 0x4, scoped, tag = 'scoped memory for tpu_custom_call.1']
    #allocation5 [shape = 'u8[262144]{0}', space=vmem, size = 0x40000, scoped, tag = 'input window, operand 1, single buffered']
    #allocation6 [shape = 's32[1]{0}', space=sflag, size = 0x4, scoped, tag = 'scoped memory for tpu_custom_call.1']
    #allocation7 [shape = 'u8[32768]{0}', space=vmem, size = 0x8000, scoped, tag = 'input window, operand 3, single buffered']
    #allocation8 [shape = 'u8[32768]{0}', space=vmem, size = 0x8000, scoped, tag = 'input window, operand 5, single buffered']
    #allocation9 [shape = 's32[1]{0}', space=sflag, size = 0x4, scoped, tag = 'scoped memory for tpu_custom_call.1']
    #allocation10 [shape = 'u8[32768]{0}', space=vmem, size = 0x8000, scoped, tag = 'input window, operand 7, single buffered']
    #allocation11 [shape = 'u8[8192]{0}', space=vmem, size = 0x2000, scoped, tag = 'output window, operand 0, single buffered']
    %14 = vsyncpa [#allocation3], 0
    %15 = vsyncpa [#allocation6], 0
    %16 = vsyncpa [#allocation9], 0
    %17 = vsyncpa [#allocation4], 0
    // Predicated region
    $region2: #{tpu_custom_call.1} parent=1 // pred_check
      _
    $region3: #{tpu_custom_call.1} parent=1 // pred_check_branch
      %19 = sbr.rel (0) target = $region5
    $region4: #{tpu_custom_call.1} parent=1 // pred_region
      %s21 = ssub.s32 1024, 1024
      %22 = vsyncadd [#allocation3], %s21
      %s23 = sshll.u32 [#allocation2], 4
      %s24 = int_to_ptr.vmem [resolvable:$true] %s23
      %29 = dma.hbm_to_vmem [thread:$0]  %s0, 1024, %s24, [#allocation3], 512, 512, 32
    $region5: #{tpu_custom_call.1} parent=1 // pred_fallthru
      _
    // Predicated region
    $region6: #{tpu_custom_call.1} parent=1 // pred_check
      _
    $region7: #{tpu_custom_call.1} parent=1 // pred_check_branch
      %31 = sbr.rel (0) target = $region9
    $region8: #{tpu_custom_call.1} parent=1 // pred_region
      %s33 = ssub.s32 8192, 8192
      %34 = vsyncadd [#allocation6], %s33
      %s35 = sshll.u32 [#allocation5], 4
      %s36 = int_to_ptr.vmem [resolvable:$true] %s35
      %41 = dma.hbm_to_vmem [thread:$0]  %s1, 8192, %s36, [#allocation6], 64, 64, 4
    $region9: #{tpu_custom_call.1} parent=1 // pred_fallthru
      _
    // Predicated region
    $region10: #{tpu_custom_call.1} parent=1 // pred_check
      _
    $region11: #{tpu_custom_call.1} parent=1 // pred_check_branch
      %43 = sbr.rel (0) target = $region13
    $region12: #{tpu_custom_call.1} parent=1 // pred_region
      _
    $region13: #{tpu_custom_call.1} parent=1 // pred_fallthru
      _
    // Predicated region
    $region14: #{tpu_custom_call.1} parent=1 // pred_check
      _
    $region15: #{tpu_custom_call.1} parent=1 // pred_check_branch
      %45 = sbr.rel (0) target = $region17
    $region16: #{tpu_custom_call.1} parent=1 // pred_region
      %s47 = ssub.s32 1024, 1024
      %48 = vsyncadd [#allocation6], %s47
      %s49 = sshll.u32 [#allocation7], 4
      %s50 = int_to_ptr.vmem [resolvable:$true] %s49
      %55 = dma.hbm_to_vmem [thread:$0]  %s3, 1024, %s50, [#allocation6], 64, 64, 4
    $region17: #{tpu_custom_call.1} parent=1 // pred_fallthru
      _
    // Predicated region
    $region18: #{tpu_custom_call.1} parent=1 // pred_check
      _
    $region19: #{tpu_custom_call.1} parent=1 // pred_check_branch
      %57 = sbr.rel (0) target = $region21
    $region20: #{tpu_custom_call.1} parent=1 // pred_region
      _
    $region21: #{tpu_custom_call.1} parent=1 // pred_fallthru
      _
    // Predicated region
    $region22: #{tpu_custom_call.1} parent=1 // pred_check
      _
    $region23: #{tpu_custom_call.1} parent=1 // pred_check_branch
      %59 = sbr.rel (0) target = $region25
    $region24: #{tpu_custom_call.1} parent=1 // pred_region
      %s61 = ssub.s32 1024, 1024
      %62 = vsyncadd [#allocation9], %s61
      %s63 = sshll.u32 [#allocation8], 4
      %s64 = int_to_ptr.vmem [resolvable:$true] %s63
      %69 = dma.hbm_to_vmem [thread:$0]  %s5, 1024, %s64, [#allocation9], 64, 64, 4
    $region25: #{tpu_custom_call.1} parent=1 // pred_fallthru
      _
    // Predicated region
    $region26: #{tpu_custom_call.1} parent=1 // pred_check
      _
    $region27: #{tpu_custom_call.1} parent=1 // pred_check_branch
      %71 = sbr.rel (0) target = $region29
    $region28: #{tpu_custom_call.1} parent=1 // pred_region
      _
    $region29: #{tpu_custom_call.1} parent=1 // pred_fallthru
      _
    // Predicated region
    $region30: #{tpu_custom_call.1} parent=1 // pred_check
      _
    $region31: #{tpu_custom_call.1} parent=1 // pred_check_branch
      %73 = sbr.rel (0) target = $region33
    $region32: #{tpu_custom_call.1} parent=1 // pred_region
      %s75 = ssub.s32 1024, 1024
      %76 = vsyncadd [#allocation9], %s75
      %s77 = sshll.u32 [#allocation10], 4
      %s78 = int_to_ptr.vmem [resolvable:$true] %s77
      %83 = dma.hbm_to_vmem [thread:$0]  %s7, 1024, %s78, [#allocation9], 64, 64, 4
    $region33: #{tpu_custom_call.1} parent=1 // pred_fallthru
      _
    // Predicated region
    $region34: #{tpu_custom_call.1} parent=1 // pred_check
      _
    $region35: #{tpu_custom_call.1} parent=1 // pred_check_branch
      %85 = sbr.rel (0) target = $region37
    $region36: #{tpu_custom_call.1} parent=1 // pred_region
      _
    $region37: #{tpu_custom_call.1} parent=1 // pred_fallthru
      _
    // Predicated region
    $region38: #{tpu_custom_call.1} parent=1 // pred_check
      _
    $region39: #{tpu_custom_call.1} parent=1 // pred_check_branch
      %87 = sbr.rel (0) target = $region41
    $region40: #{tpu_custom_call.1} parent=1 // pred_region
      %88 = dma.done [#allocation3], 1024
    $region41: #{tpu_custom_call.1} parent=1 // pred_fallthru
      _
    // Predicated region
    $region42: #{tpu_custom_call.1} parent=1 // pred_check
      _
    $region43: #{tpu_custom_call.1} parent=1 // pred_check_branch
      %90 = sbr.rel (0) target = $region45
    $region44: #{tpu_custom_call.1} parent=1 // pred_region
      %91 = dma.done [#allocation6], 8192
    $region45: #{tpu_custom_call.1} parent=1 // pred_fallthru
      _
    // Predicated region
    $region46: #{tpu_custom_call.1} parent=1 // pred_check
      _
    $region47: #{tpu_custom_call.1} parent=1 // pred_check_branch
      %93 = sbr.rel (0) target = $region49
    $region48: #{tpu_custom_call.1} parent=1 // pred_region
      %94 = dma.done [#allocation6], 1024
    $region49: #{tpu_custom_call.1} parent=1 // pred_fallthru
      _
    // Predicated region
    $region50: #{tpu_custom_call.1} parent=1 // pred_check
      _
    $region51: #{tpu_custom_call.1} parent=1 // pred_check_branch
      %96 = sbr.rel (0) target = $region53
    $region52: #{tpu_custom_call.1} parent=1 // pred_region
      %97 = dma.done [#allocation9], 1024
    $region53: #{tpu_custom_call.1} parent=1 // pred_fallthru
      _
    // Predicated region
    $region54: #{tpu_custom_call.1} parent=1 // pred_check
      _
    $region55: #{tpu_custom_call.1} parent=1 // pred_check_branch
      %99 = sbr.rel (0) target = $region57
    $region56: #{tpu_custom_call.1} parent=1 // pred_region
      %100 = dma.done [#allocation9], 1024
    $region57: #{tpu_custom_call.1} parent=1 // pred_fallthru
      _
    %v102 = vld [vmem:[#allocation2] sm:$0xff]
    %v103 = vld [vmem:[#allocation2 + $0x8] sm:$0xff]
    %v104 = vld [vmem:[#allocation2 + $0x10] sm:$0xff]
    %v105 = vld [vmem:[#allocation2 + $0x18] sm:$0xff]
    %v106 = vld [vmem:[#allocation2 + $0x20] sm:$0xff]
    %v107 = vld [vmem:[#allocation2 + $0x28] sm:$0xff]
    %v108 = vld [vmem:[#allocation2 + $0x30] sm:$0xff]
    %v109 = vld [vmem:[#allocation2 + $0x38] sm:$0xff]
    %v110 = vld [vmem:[#allocation5] sm:$0xf]
    %v111 = vld [vmem:[#allocation5 + $0x4] sm:$0xf]
    %v112 = vld [vmem:[#allocation5 + $0x8] sm:$0xf]
    %v113 = vld [vmem:[#allocation5 + $0xc] sm:$0xf]
    %v114 = vld [vmem:[#allocation5 + $0x10] sm:$0xf]
    %v115 = vld [vmem:[#allocation5 + $0x14] sm:$0xf]
    %v116 = vld [vmem:[#allocation5 + $0x18] sm:$0xf]
    %v117 = vld [vmem:[#allocation5 + $0x1c] sm:$0xf]
    %v118 = vld [vmem:[#allocation5 + $0x20] sm:$0xf]
    %v119 = vld [vmem:[#allocation5 + $0x24] sm:$0xf]
    %v120 = vld [vmem:[#allocation5 + $0x28] sm:$0xf]
    %v121 = vld [vmem:[#allocation5 + $0x2c] sm:$0xf]
    %v122 = vld [vmem:[#allocation5 + $0x30] sm:$0xf]
    %v123 = vld [vmem:[#allocation5 + $0x34] sm:$0xf]
    %v124 = vld [vmem:[#allocation5 + $0x38] sm:$0xf]
    %v125 = vld [vmem:[#allocation5 + $0x3c] sm:$0xf]
    %v126 = vld [vmem:[#allocation5 + $0x40] sm:$0xf]
    %v127 = vld [vmem:[#allocation5 + $0x44] sm:$0xf]
    %v128 = vld [vmem:[#allocation5 + $0x48] sm:$0xf]
    %v129 = vld [vmem:[#allocation5 + $0x4c] sm:$0xf]
    %v130 = vld [vmem:[#allocation5 + $0x50] sm:$0xf]
    %v131 = vld [vmem:[#allocation5 + $0x54] sm:$0xf]
    %v132 = vld [vmem:[#allocation5 + $0x58] sm:$0xf]
    %v133 = vld [vmem:[#allocation5 + $0x5c] sm:$0xf]
    %v134 = vld [vmem:[#allocation5 + $0x60] sm:$0xf]
    %v135 = vld [vmem:[#allocation5 + $0x64] sm:$0xf]
    %v136 = vld [vmem:[#allocation5 + $0x68] sm:$0xf]
    %v137 = vld [vmem:[#allocation5 + $0x6c] sm:$0xf]
    %v138 = vld [vmem:[#allocation5 + $0x70] sm:$0xf]
    %v139 = vld [vmem:[#allocation5 + $0x74] sm:$0xf]
    %v140 = vld [vmem:[#allocation5 + $0x78] sm:$0xf]
    %v141 = vld [vmem:[#allocation5 + $0x7c] sm:$0xf]
    %v142 = vld [vmem:[#allocation5 + $0x80] sm:$0xf]
    %v143 = vld [vmem:[#allocation5 + $0x84] sm:$0xf]
    %v144 = vld [vmem:[#allocation5 + $0x88] sm:$0xf]
    %v145 = vld [vmem:[#allocation5 + $0x8c] sm:$0xf]
    %v146 = vld [vmem:[#allocation5 + $0x90] sm:$0xf]
    %v147 = vld [vmem:[#allocation5 + $0x94] sm:$0xf]
    %v148 = vld [vmem:[#allocation5 + $0x98] sm:$0xf]
    %v149 = vld [vmem:[#allocation5 + $0x9c] sm:$0xf]
    %v150 = vld [vmem:[#allocation5 + $0xa0] sm:$0xf]
    %v151 = vld [vmem:[#allocation5 + $0xa4] sm:$0xf]
    %v152 = vld [vmem:[#allocation5 + $0xa8] sm:$0xf]
    %v153 = vld [vmem:[#allocation5 + $0xac] sm:$0xf]
    %v154 = vld [vmem:[#allocation5 + $0xb0] sm:$0xf]
    %v155 = vld [vmem:[#allocation5 + $0xb4] sm:$0xf]
    %v156 = vld [vmem:[#allocation5 + $0xb8] sm:$0xf]
    %v157 = vld [vmem:[#allocation5 + $0xbc] sm:$0xf]
    %v158 = vld [vmem:[#allocation5 + $0xc0] sm:$0xf]
    %v159 = vld [vmem:[#allocation5 + $0xc4] sm:$0xf]
    %v160 = vld [vmem:[#allocation5 + $0xc8] sm:$0xf]
    %v161 = vld [vmem:[#allocation5 + $0xcc] sm:$0xf]
    %v162 = vld [vmem:[#allocation5 + $0xd0] sm:$0xf]
    %v163 = vld [vmem:[#allocation5 + $0xd4] sm:$0xf]
    %v164 = vld [vmem:[#allocation5 + $0xd8] sm:$0xf]
    %v165 = vld [vmem:[#allocation5 + $0xdc] sm:$0xf]
    %v166 = vld [vmem:[#allocation5 + $0xe0] sm:$0xf]
    %v167 = vld [vmem:[#allocation5 + $0xe4] sm:$0xf]
    %v168 = vld [vmem:[#allocation5 + $0xe8] sm:$0xf]
    %v169 = vld [vmem:[#allocation5 + $0xec] sm:$0xf]
    %v170 = vld [vmem:[#allocation5 + $0xf0] sm:$0xf]
    %v171 = vld [vmem:[#allocation5 + $0xf4] sm:$0xf]
    %v172 = vld [vmem:[#allocation5 + $0xf8] sm:$0xf]
    %v173 = vld [vmem:[#allocation5 + $0xfc] sm:$0xf]
    %v174 = vld [vmem:[#allocation5 + $0x100] sm:$0xf]
    %v175 = vld [vmem:[#allocation5 + $0x104] sm:$0xf]
    %v176 = vld [vmem:[#allocation5 + $0x108] sm:$0xf]
    %v177 = vld [vmem:[#allocation5 + $0x10c] sm:$0xf]
    %v178 = vld [vmem:[#allocation5 + $0x110] sm:$0xf]
    %v179 = vld [vmem:[#allocation5 + $0x114] sm:$0xf]
    %v180 = vld [vmem:[#allocation5 + $0x118] sm:$0xf]
    %v181 = vld [vmem:[#allocation5 + $0x11c] sm:$0xf]
    %v182 = vld [vmem:[#allocation5 + $0x120] sm:$0xf]
    %v183 = vld [vmem:[#allocation5 + $0x124] sm:$0xf]
    %v184 = vld [vmem:[#allocation5 + $0x128] sm:$0xf]
    %v185 = vld [vmem:[#allocation5 + $0x12c] sm:$0xf]
    %v186 = vld [vmem:[#allocation5 + $0x130] sm:$0xf]
    %v187 = vld [vmem:[#allocation5 + $0x134] sm:$0xf]
    %v188 = vld [vmem:[#allocation5 + $0x138] sm:$0xf]
    %v189 = vld [vmem:[#allocation5 + $0x13c] sm:$0xf]
    %v190 = vld [vmem:[#allocation5 + $0x140] sm:$0xf]
    %v191 = vld [vmem:[#allocation5 + $0x144] sm:$0xf]
    %v192 = vld [vmem:[#allocation5 + $0x148] sm:$0xf]
    %v193 = vld [vmem:[#allocation5 + $0x14c] sm:$0xf]
    %v194 = vld [vmem:[#allocation5 + $0x150] sm:$0xf]
    %v195 = vld [vmem:[#allocation5 + $0x154] sm:$0xf]
    %v196 = vld [vmem:[#allocation5 + $0x158] sm:$0xf]
    %v197 = vld [vmem:[#allocation5 + $0x15c] sm:$0xf]
    %v198 = vld [vmem:[#allocation5 + $0x160] sm:$0xf]
    %v199 = vld [vmem:[#allocation5 + $0x164] sm:$0xf]
    %v200 = vld [vmem:[#allocation5 + $0x168] sm:$0xf]
    %v201 = vld [vmem:[#allocation5 + $0x16c] sm:$0xf]
    %v202 = vld [vmem:[#allocation5 + $0x170] sm:$0xf]
    %v203 = vld [vmem:[#allocation5 + $0x174] sm:$0xf]
    %v204 = vld [vmem:[#allocation5 + $0x178] sm:$0xf]
    %v205 = vld [vmem:[#allocation5 + $0x17c] sm:$0xf]
    %v206 = vld [vmem:[#allocation5 + $0x180] sm:$0xf]
    %v207 = vld [vmem:[#allocation5 + $0x184] sm:$0xf]
    %v208 = vld [vmem:[#allocation5 + $0x188] sm:$0xf]
    %v209 = vld [vmem:[#allocation5 + $0x18c] sm:$0xf]
    %v210 = vld [vmem:[#allocation5 + $0x190] sm:$0xf]
    %v211 = vld [vmem:[#allocation5 + $0x194] sm:$0xf]
    %v212 = vld [vmem:[#allocation5 + $0x198] sm:$0xf]
    %v213 = vld [vmem:[#allocation5 + $0x19c] sm:$0xf]
    %v214 = vld [vmem:[#allocation5 + $0x1a0] sm:$0xf]
    %v215 = vld [vmem:[#allocation5 + $0x1a4] sm:$0xf]
    %v216 = vld [vmem:[#allocation5 + $0x1a8] sm:$0xf]
    %v217 = vld [vmem:[#allocation5 + $0x1ac] sm:$0xf]
    %v218 = vld [vmem:[#allocation5 + $0x1b0] sm:$0xf]
    %v219 = vld [vmem:[#allocation5 + $0x1b4] sm:$0xf]
    %v220 = vld [vmem:[#allocation5 + $0x1b8] sm:$0xf]
    %v221 = vld [vmem:[#allocation5 + $0x1bc] sm:$0xf]
    %v222 = vld [vmem:[#allocation5 + $0x1c0] sm:$0xf]
    %v223 = vld [vmem:[#allocation5 + $0x1c4] sm:$0xf]
    %v224 = vld [vmem:[#allocation5 + $0x1c8] sm:$0xf]
    %v225 = vld [vmem:[#allocation5 + $0x1cc] sm:$0xf]
    %v226 = vld [vmem:[#allocation5 + $0x1d0] sm:$0xf]
    %v227 = vld [vmem:[#allocation5 + $0x1d4] sm:$0xf]
    %v228 = vld [vmem:[#allocation5 + $0x1d8] sm:$0xf]
    %v229 = vld [vmem:[#allocation5 + $0x1dc] sm:$0xf]
    %v230 = vld [vmem:[#allocation5 + $0x1e0] sm:$0xf]
    %v231 = vld [vmem:[#allocation5 + $0x1e4] sm:$0xf]
    %v232 = vld [vmem:[#allocation5 + $0x1e8] sm:$0xf]
    %v233 = vld [vmem:[#allocation5 + $0x1ec] sm:$0xf]
    %v234 = vld [vmem:[#allocation5 + $0x1f0] sm:$0xf]
    %v235 = vld [vmem:[#allocation5 + $0x1f4] sm:$0xf]
    %v236 = vld [vmem:[#allocation5 + $0x1f8] sm:$0xf]
    %v237 = vld [vmem:[#allocation5 + $0x1fc] sm:$0xf]
    %v238 = vld [vmem:[%s2] sm:$0x1]
    %v240 = vlaneseq
    %v241 = vshrl.u32 %v240, 7
    %v242 = vsub.s32 0, %v241
    %v243 = vrot.slane %v238, %v242
    %v253 = vunpack.c.l.b16 %v102
    %v254 = vunpack.c.h.b16 %v102
    %v255 = vunpack.c.l.b16 %v103
    %v256 = vunpack.c.h.b16 %v103
    %v257 = vunpack.c.l.b16 %v104
    %v258 = vunpack.c.h.b16 %v104
    %v259 = vunpack.c.l.b16 %v105
    %v260 = vunpack.c.h.b16 %v105
    %v261 = vunpack.c.l.b16 %v106
    %v262 = vunpack.c.h.b16 %v106
    %v263 = vunpack.c.l.b16 %v107
    %v264 = vunpack.c.h.b16 %v107
    %v265 = vunpack.c.l.b16 %v108
    %v266 = vunpack.c.h.b16 %v108
    %v267 = vunpack.c.l.b16 %v109
    %v268 = vunpack.c.h.b16 %v109
    %v269 = vpack.c.b16 %v261, %v253
    %v270 = vpack.c.b16 %v262, %v254
    %v271 = vpack.c.b16 %v263, %v255
    %v272 = vpack.c.b16 %v264, %v256
    %v273 = vpack.c.b16 %v265, %v257
    %v274 = vpack.c.b16 %v266, %v258
    %v275 = vpack.c.b16 %v267, %v259
    %v276 = vpack.c.b16 %v268, %v260
    %v413 = vunpack.c.l.b16 %v110
    %v414 = vunpack.c.l.b16 %v111
    %v415 = vunpack.c.l.b16 %v112
    %v416 = vunpack.c.l.b16 %v113
    %v417 = vunpack.c.l.b16 %v114
    %v418 = vunpack.c.l.b16 %v115
    %v419 = vunpack.c.l.b16 %v116
    %v420 = vunpack.c.l.b16 %v117
    %v421 = vunpack.c.l.b16 %v118
    %v422 = vunpack.c.l.b16 %v119
    %v423 = vunpack.c.l.b16 %v120
    %v424 = vunpack.c.l.b16 %v121
    %v425 = vunpack.c.l.b16 %v122
    %v426 = vunpack.c.l.b16 %v123
    %v427 = vunpack.c.l.b16 %v124
    %v428 = vunpack.c.l.b16 %v125
    %v429 = vunpack.c.l.b16 %v126
    %v430 = vunpack.c.l.b16 %v127
    %v431 = vunpack.c.l.b16 %v128
    %v432 = vunpack.c.l.b16 %v129
    %v433 = vunpack.c.l.b16 %v130
    %v434 = vunpack.c.l.b16 %v131
    %v435 = vunpack.c.l.b16 %v132
    %v436 = vunpack.c.l.b16 %v133
    %v437 = vunpack.c.l.b16 %v134
    %v438 = vunpack.c.l.b16 %v135
    %v439 = vunpack.c.l.b16 %v136
    %v440 = vunpack.c.l.b16 %v137
    %v441 = vunpack.c.l.b16 %v138
    %v442 = vunpack.c.l.b16 %v139
    %v443 = vunpack.c.l.b16 %v140
    %v444 = vunpack.c.l.b16 %v141
    %v445 = vunpack.c.l.b16 %v142
    %v446 = vunpack.c.l.b16 %v143
    %v447 = vunpack.c.l.b16 %v144
    %v448 = vunpack.c.l.b16 %v145
    %v449 = vunpack.c.l.b16 %v146
    %v450 = vunpack.c.l.b16 %v147
    %v451 = vunpack.c.l.b16 %v148
    %v452 = vunpack.c.l.b16 %v149
    %v453 = vunpack.c.l.b16 %v150
    %v454 = vunpack.c.l.b16 %v151
    %v455 = vunpack.c.l.b16 %v152
    %v456 = vunpack.c.l.b16 %v153
    %v457 = vunpack.c.l.b16 %v154
    %v458 = vunpack.c.l.b16 %v155
    %v459 = vunpack.c.l.b16 %v156
    %v460 = vunpack.c.l.b16 %v157
    %v461 = vunpack.c.l.b16 %v158
    %v462 = vunpack.c.l.b16 %v159
    %v463 = vunpack.c.l.b16 %v160
    %v464 = vunpack.c.l.b16 %v161
    %v465 = vunpack.c.l.b16 %v162
    %v466 = vunpack.c.l.b16 %v163
    %v467 = vunpack.c.l.b16 %v164
    %v468 = vunpack.c.l.b16 %v165
    %v469 = vunpack.c.l.b16 %v166
    %v470 = vunpack.c.l.b16 %v167
    %v471 = vunpack.c.l.b16 %v168
    %v472 = vunpack.c.l.b16 %v169
    %v473 = vunpack.c.l.b16 %v170
    %v474 = vunpack.c.l.b16 %v171
    %v475 = vunpack.c.l.b16 %v172
    %v476 = vunpack.c.l.b16 %v173
    %v477 = vunpack.c.l.b16 %v174
    %v478 = vunpack.c.l.b16 %v175
    %v479 = vunpack.c.l.b16 %v176
    %v480 = vunpack.c.l.b16 %v177
    %v481 = vunpack.c.l.b16 %v178
    %v482 = vunpack.c.l.b16 %v179
    %v483 = vunpack.c.l.b16 %v180
    %v484 = vunpack.c.l.b16 %v181
    %v485 = vunpack.c.l.b16 %v182
    %v486 = vunpack.c.l.b16 %v183
    %v487 = vunpack.c.l.b16 %v184
    %v488 = vunpack.c.l.b16 %v185
    %v489 = vunpack.c.l.b16 %v186
    %v490 = vunpack.c.l.b16 %v187
    %v491 = vunpack.c.l.b16 %v188
    %v492 = vunpack.c.l.b16 %v189
    %v493 = vunpack.c.l.b16 %v190
    %v494 = vunpack.c.l.b16 %v191
    %v495 = vunpack.c.l.b16 %v192
    %v496 = vunpack.c.l.b16 %v193
    %v497 = vunpack.c.l.b16 %v194
    %v498 = vunpack.c.l.b16 %v195
    %v499 = vunpack.c.l.b16 %v196
    %v500 = vunpack.c.l.b16 %v197
    %v501 = vunpack.c.l.b16 %v198
    %v502 = vunpack.c.l.b16 %v199
    %v503 = vunpack.c.l.b16 %v200
    %v504 = vunpack.c.l.b16 %v201
    %v505 = vunpack.c.l.b16 %v202
    %v506 = vunpack.c.l.b16 %v203
    %v507 = vunpack.c.l.b16 %v204
    %v508 = vunpack.c.l.b16 %v205
    %v509 = vunpack.c.l.b16 %v206
    %v510 = vunpack.c.l.b16 %v207
    %v511 = vunpack.c.l.b16 %v208
    %v512 = vunpack.c.l.b16 %v209
    %v513 = vunpack.c.l.b16 %v210
    %v514 = vunpack.c.l.b16 %v211
    %v515 = vunpack.c.l.b16 %v212
    %v516 = vunpack.c.l.b16 %v213
    %v517 = vunpack.c.l.b16 %v214
    %v518 = vunpack.c.l.b16 %v215
    %v519 = vunpack.c.l.b16 %v216
    %v520 = vunpack.c.l.b16 %v217
    %v521 = vunpack.c.l.b16 %v218
    %v522 = vunpack.c.l.b16 %v219
    %v523 = vunpack.c.l.b16 %v220
    %v524 = vunpack.c.l.b16 %v221
    %v525 = vunpack.c.l.b16 %v222
    %v526 = vunpack.c.l.b16 %v223
    %v527 = vunpack.c.l.b16 %v224
    %v528 = vunpack.c.l.b16 %v225
    %v529 = vunpack.c.l.b16 %v226
    %v530 = vunpack.c.l.b16 %v227
    %v531 = vunpack.c.l.b16 %v228
    %v532 = vunpack.c.l.b16 %v229
    %v533 = vunpack.c.l.b16 %v230
    %v534 = vunpack.c.l.b16 %v231
    %v535 = vunpack.c.l.b16 %v232
    %v536 = vunpack.c.l.b16 %v233
    %v537 = vunpack.c.l.b16 %v234
    %v538 = vunpack.c.l.b16 %v235
    %v539 = vunpack.c.l.b16 %v236
    %v540 = vunpack.c.l.b16 %v237
    %v541 = vpack.c.b16 %v414, %v413
    %v542 = vpack.c.b16 %v416, %v415
    %v543 = vpack.c.b16 %v418, %v417
    %v544 = vpack.c.b16 %v420, %v419
    %v545 = vpack.c.b16 %v422, %v421
    %v546 = vpack.c.b16 %v424, %v423
    %v547 = vpack.c.b16 %v426, %v425
    %v548 = vpack.c.b16 %v428, %v427
    %v549 = vpack.c.b16 %v430, %v429
    %v550 = vpack.c.b16 %v432, %v431
    %v551 = vpack.c.b16 %v434, %v433
    %v552 = vpack.c.b16 %v436, %v435
    %v553 = vpack.c.b16 %v438, %v437
    %v554 = vpack.c.b16 %v440, %v439
    %v555 = vpack.c.b16 %v442, %v441
    %v556 = vpack.c.b16 %v444, %v443
    %v557 = vpack.c.b16 %v446, %v445
    %v558 = vpack.c.b16 %v448, %v447
    %v559 = vpack.c.b16 %v450, %v449
    %v560 = vpack.c.b16 %v452, %v451
    %v561 = vpack.c.b16 %v454, %v453
    %v562 = vpack.c.b16 %v456, %v455
    %v563 = vpack.c.b16 %v458, %v457
    %v564 = vpack.c.b16 %v460, %v459
    %v565 = vpack.c.b16 %v462, %v461
    %v566 = vpack.c.b16 %v464, %v463
    %v567 = vpack.c.b16 %v466, %v465
    %v568 = vpack.c.b16 %v468, %v467
    %v569 = vpack.c.b16 %v470, %v469
    %v570 = vpack.c.b16 %v472, %v471
    %v571 = vpack.c.b16 %v474, %v473
    %v572 = vpack.c.b16 %v476, %v475
    %v573 = vpack.c.b16 %v478, %v477
    %v574 = vpack.c.b16 %v480, %v479
    %v575 = vpack.c.b16 %v482, %v481
    %v576 = vpack.c.b16 %v484, %v483
    %v577 = vpack.c.b16 %v486, %v485
    %v578 = vpack.c.b16 %v488, %v487
    %v579 = vpack.c.b16 %v490, %v489
    %v580 = vpack.c.b16 %v492, %v491
    %v581 = vpack.c.b16 %v494, %v493
    %v582 = vpack.c.b16 %v496, %v495
    %v583 = vpack.c.b16 %v498, %v497
    %v584 = vpack.c.b16 %v500, %v499
    %v585 = vpack.c.b16 %v502, %v501
    %v586 = vpack.c.b16 %v504, %v503
    %v587 = vpack.c.b16 %v506, %v505
    %v588 = vpack.c.b16 %v508, %v507
    %v589 = vpack.c.b16 %v510, %v509
    %v590 = vpack.c.b16 %v512, %v511
    %v591 = vpack.c.b16 %v514, %v513
    %v592 = vpack.c.b16 %v516, %v515
    %v593 = vpack.c.b16 %v518, %v517
    %v594 = vpack.c.b16 %v520, %v519
    %v595 = vpack.c.b16 %v522, %v521
    %v596 = vpack.c.b16 %v524, %v523
    %v597 = vpack.c.b16 %v526, %v525
    %v598 = vpack.c.b16 %v528, %v527
    %v599 = vpack.c.b16 %v530, %v529
    %v600 = vpack.c.b16 %v532, %v531
    %v601 = vpack.c.b16 %v534, %v533
    %v602 = vpack.c.b16 %v536, %v535
    %v603 = vpack.c.b16 %v538, %v537
    %v604 = vpack.c.b16 %v540, %v539
    %669 = vmatprep.subr.bf16.mxu0 0
    %670 = vmatpush1.bf16.msra.mxu0 %v541
    %671 = vmatprep.subr.bf16.mxu0 0
    %672 = vmatpush1.bf16.msra.mxu0 %v542
    %673 = vmatprep.subr.bf16.mxu0 0
    %674 = vmatpush1.bf16.msra.mxu0 %v543
    %675 = vmatprep.subr.bf16.mxu0 0
    %676 = vmatpush1.bf16.msra.mxu0 %v544
    %677 = vmatprep.subr.bf16.mxu0 0
    %678 = vmatpush1.bf16.msra.mxu0 %v545
    %679 = vmatprep.subr.bf16.mxu0 0
    %680 = vmatpush1.bf16.msra.mxu0 %v546
    %681 = vmatprep.subr.bf16.mxu0 0
    %682 = vmatpush1.bf16.msra.mxu0 %v547
    %683 = vmatprep.subr.bf16.mxu0 0
    %684 = vmatpush1.bf16.msra.mxu0 %v548
    %685 = vmatprep.subr.bf16.mxu0 0
    %686 = vmatpush1.bf16.msra.mxu0 %v549
    %687 = vmatprep.subr.bf16.mxu0 0
    %688 = vmatpush1.bf16.msra.mxu0 %v550
    %689 = vmatprep.subr.bf16.mxu0 0
    %690 = vmatpush1.bf16.msra.mxu0 %v551
    %691 = vmatprep.subr.bf16.mxu0 0
    %692 = vmatpush1.bf16.msra.mxu0 %v552
    %693 = vmatprep.subr.bf16.mxu0 0
    %694 = vmatpush1.bf16.msra.mxu0 %v553
    %695 = vmatprep.subr.bf16.mxu0 0
    %696 = vmatpush1.bf16.msra.mxu0 %v554
    %697 = vmatprep.subr.bf16.mxu0 0
    %698 = vmatpush1.bf16.msra.mxu0 %v555
    %699 = vmatprep.subr.bf16.mxu0 0
    %700 = vmatpush1.bf16.msra.mxu0 %v556
    %701 = vmatprep.mubr.bf16.mxu0 %v270
    %702 = vmatmul.mubr.bf16.gmra.mrb[0].mxu0 %v269
    %v703 = vpop.f32.mrb[0].mxu0
    %v704 = vadd.f32 %v243, %v703
    %v705 = vpop.f32.mrb[0].mxu0
    %v706 = vpop.f32.mrb[0].mxu0
    %v707 = vadd.f32 %v243, %v706
    %v708 = vpop.f32.mrb[0].mxu0
    %709 = vdwg.mxu0
    %710 = vmatprep.subr.bf16.mxu0 0
    %711 = vmatpush1.bf16.msra.mxu0 %v557
    %712 = vmatprep.subr.bf16.mxu0 0
    %713 = vmatpush1.bf16.msra.mxu0 %v558
    %714 = vmatprep.subr.bf16.mxu0 0
    %715 = vmatpush1.bf16.msra.mxu0 %v559
    %716 = vmatprep.subr.bf16.mxu0 0
    %717 = vmatpush1.bf16.msra.mxu0 %v560
    %718 = vmatprep.subr.bf16.mxu0 0
    %719 = vmatpush1.bf16.msra.mxu0 %v561
    %720 = vmatprep.subr.bf16.mxu0 0
    %721 = vmatpush1.bf16.msra.mxu0 %v562
    %722 = vmatprep.subr.bf16.mxu0 0
    %723 = vmatpush1.bf16.msra.mxu0 %v563
    %724 = vmatprep.subr.bf16.mxu0 0
    %725 = vmatpush1.bf16.msra.mxu0 %v564
    %726 = vmatprep.subr.bf16.mxu0 0
    %727 = vmatpush1.bf16.msra.mxu0 %v565
    %728 = vmatprep.subr.bf16.mxu0 0
    %729 = vmatpush1.bf16.msra.mxu0 %v566
    %730 = vmatprep.subr.bf16.mxu0 0
    %731 = vmatpush1.bf16.msra.mxu0 %v567
    %732 = vmatprep.subr.bf16.mxu0 0
    %733 = vmatpush1.bf16.msra.mxu0 %v568
    %734 = vmatprep.subr.bf16.mxu0 0
    %735 = vmatpush1.bf16.msra.mxu0 %v569
    %736 = vmatprep.subr.bf16.mxu0 0
    %737 = vmatpush1.bf16.msra.mxu0 %v570
    %738 = vmatprep.subr.bf16.mxu0 0
    %739 = vmatpush1.bf16.msra.mxu0 %v571
    %740 = vmatprep.subr.bf16.mxu0 0
    %741 = vmatpush1.bf16.msra.mxu0 %v572
    %742 = vmatprep.mubr.bf16.mxu0 %v272
    %743 = vmatmul.mubr.bf16.gmra.mrb[0].mxu0 %v271
    %v744 = vpop.f32.mrb[0].mxu0
    %v745 = vadd.f32 %v704, %v744
    %v746 = vpop.f32.mrb[0].mxu0
    %v747 = vpop.f32.mrb[0].mxu0
    %v748 = vadd.f32 %v707, %v747
    %v749 = vpop.f32.mrb[0].mxu0
    %750 = vdwg.mxu0
    %751 = vmatprep.subr.bf16.mxu0 0
    %752 = vmatpush1.bf16.msra.mxu0 %v573
    %753 = vmatprep.subr.bf16.mxu0 0
    %754 = vmatpush1.bf16.msra.mxu0 %v574
    %755 = vmatprep.subr.bf16.mxu0 0
    %756 = vmatpush1.bf16.msra.mxu0 %v575
    %757 = vmatprep.subr.bf16.mxu0 0
    %758 = vmatpush1.bf16.msra.mxu0 %v576
    %759 = vmatprep.subr.bf16.mxu0 0
    %760 = vmatpush1.bf16.msra.mxu0 %v577
    %761 = vmatprep.subr.bf16.mxu0 0
    %762 = vmatpush1.bf16.msra.mxu0 %v578
    %763 = vmatprep.subr.bf16.mxu0 0
    %764 = vmatpush1.bf16.msra.mxu0 %v579
    %765 = vmatprep.subr.bf16.mxu0 0
    %766 = vmatpush1.bf16.msra.mxu0 %v580
    %767 = vmatprep.subr.bf16.mxu0 0
    %768 = vmatpush1.bf16.msra.mxu0 %v581
    %769 = vmatprep.subr.bf16.mxu0 0
    %770 = vmatpush1.bf16.msra.mxu0 %v582
    %771 = vmatprep.subr.bf16.mxu0 0
    %772 = vmatpush1.bf16.msra.mxu0 %v583
    %773 = vmatprep.subr.bf16.mxu0 0
    %774 = vmatpush1.bf16.msra.mxu0 %v584
    %775 = vmatprep.subr.bf16.mxu0 0
    %776 = vmatpush1.bf16.msra.mxu0 %v585
    %777 = vmatprep.subr.bf16.mxu0 0
    %778 = vmatpush1.bf16.msra.mxu0 %v586
    %779 = vmatprep.subr.bf16.mxu0 0
    %780 = vmatpush1.bf16.msra.mxu0 %v587
    %781 = vmatprep.subr.bf16.mxu0 0
    %782 = vmatpush1.bf16.msra.mxu0 %v588
    %783 = vmatprep.mubr.bf16.mxu0 %v274
    %784 = vmatmul.mubr.bf16.gmra.mrb[0].mxu0 %v273
    %v785 = vpop.f32.mrb[0].mxu0
    %v786 = vadd.f32 %v745, %v785
    %v787 = vpop.f32.mrb[0].mxu0
    %v788 = vpop.f32.mrb[0].mxu0
    %v789 = vadd.f32 %v748, %v788
    %v790 = vpop.f32.mrb[0].mxu0
    %791 = vdwg.mxu0
    %792 = vmatprep.subr.bf16.mxu0 0
    %793 = vmatpush1.bf16.msra.mxu0 %v589
    %794 = vmatprep.subr.bf16.mxu0 0
    %795 = vmatpush1.bf16.msra.mxu0 %v590
    %796 = vmatprep.subr.bf16.mxu0 0
    %797 = vmatpush1.bf16.msra.mxu0 %v591
    %798 = vmatprep.subr.bf16.mxu0 0
    %799 = vmatpush1.bf16.msra.mxu0 %v592
    %800 = vmatprep.subr.bf16.mxu0 0
    %801 = vmatpush1.bf16.msra.mxu0 %v593
    %802 = vmatprep.subr.bf16.mxu0 0
    %803 = vmatpush1.bf16.msra.mxu0 %v594
    %804 = vmatprep.subr.bf16.mxu0 0
    %805 = vmatpush1.bf16.msra.mxu0 %v595
    %806 = vmatprep.subr.bf16.mxu0 0
    %807 = vmatpush1.bf16.msra.mxu0 %v596
    %808 = vmatprep.subr.bf16.mxu0 0
    %809 = vmatpush1.bf16.msra.mxu0 %v597
    %810 = vmatprep.subr.bf16.mxu0 0
    %811 = vmatpush1.bf16.msra.mxu0 %v598
    %812 = vmatprep.subr.bf16.mxu0 0
    %813 = vmatpush1.bf16.msra.mxu0 %v599
    %814 = vmatprep.subr.bf16.mxu0 0
    %815 = vmatpush1.bf16.msra.mxu0 %v600
    %816 = vmatprep.subr.bf16.mxu0 0
    %817 = vmatpush1.bf16.msra.mxu0 %v601
    %818 = vmatprep.subr.bf16.mxu0 0
    %819 = vmatpush1.bf16.msra.mxu0 %v602
    %820 = vmatprep.subr.bf16.mxu0 0
    %821 = vmatpush1.bf16.msra.mxu0 %v603
    %822 = vmatprep.subr.bf16.mxu0 0
    %823 = vmatpush1.bf16.msra.mxu0 %v604
    %824 = vmatprep.mubr.bf16.mxu0 %v276
    %825 = vmatmul.mubr.bf16.gmra.mrb[0].mxu0 %v275
    %v826 = vpop.f32.mrb[0].mxu0
    %v827 = vadd.f32 %v786, %v826
    %v828 = vpop.f32.mrb[0].mxu0
    %v829 = vpop.f32.mrb[0].mxu0
    %v830 = vadd.f32 %v789, %v829
    %v831 = vpop.f32.mrb[0].mxu0
    %832 = vdwg.mxu0
    %v833 = vpack.c.bf16 %v830, %v827
    %v834 = vld [vmem:[#allocation7] sm:$0xf]
    %v835 = vld [vmem:[#allocation7 + $0x4] sm:$0xf]
    %v836 = vld [vmem:[#allocation7 + $0x8] sm:$0xf]
    %v837 = vld [vmem:[#allocation7 + $0xc] sm:$0xf]
    %v838 = vld [vmem:[#allocation7 + $0x10] sm:$0xf]
    %v839 = vld [vmem:[#allocation7 + $0x14] sm:$0xf]
    %v840 = vld [vmem:[#allocation7 + $0x18] sm:$0xf]
    %v841 = vld [vmem:[#allocation7 + $0x1c] sm:$0xf]
    %v842 = vld [vmem:[#allocation7 + $0x20] sm:$0xf]
    %v843 = vld [vmem:[#allocation7 + $0x24] sm:$0xf]
    %v844 = vld [vmem:[#allocation7 + $0x28] sm:$0xf]
    %v845 = vld [vmem:[#allocation7 + $0x2c] sm:$0xf]
    %v846 = vld [vmem:[#allocation7 + $0x30] sm:$0xf]
    %v847 = vld [vmem:[#allocation7 + $0x34] sm:$0xf]
    %v848 = vld [vmem:[#allocation7 + $0x38] sm:$0xf]
    %v849 = vld [vmem:[#allocation7 + $0x3c] sm:$0xf]
    %v850 = vld [vmem:[%s4] sm:$0x1]
    %v851 = vlaneseq
    %v852 = vshrl.u32 %v851, 7
    %v853 = vsub.s32 0, %v852
    %v854 = vrot.slane %v850, %v853
    %v871 = vunpack.c.l.b16 %v834
    %v872 = vunpack.c.l.b16 %v835
    %v873 = vunpack.c.l.b16 %v836
    %v874 = vunpack.c.l.b16 %v837
    %v875 = vunpack.c.l.b16 %v838
    %v876 = vunpack.c.l.b16 %v839
    %v877 = vunpack.c.l.b16 %v840
    %v878 = vunpack.c.l.b16 %v841
    %v879 = vunpack.c.l.b16 %v842
    %v880 = vunpack.c.l.b16 %v843
    %v881 = vunpack.c.l.b16 %v844
    %v882 = vunpack.c.l.b16 %v845
    %v883 = vunpack.c.l.b16 %v846
    %v884 = vunpack.c.l.b16 %v847
    %v885 = vunpack.c.l.b16 %v848
    %v886 = vunpack.c.l.b16 %v849
    %v887 = vpack.c.b16 %v872, %v871
    %v888 = vpack.c.b16 %v874, %v873
    %v889 = vpack.c.b16 %v876, %v875
    %v890 = vpack.c.b16 %v878, %v877
    %v891 = vpack.c.b16 %v880, %v879
    %v892 = vpack.c.b16 %v882, %v881
    %v893 = vpack.c.b16 %v884, %v883
    %v894 = vpack.c.b16 %v886, %v885
    %903 = vmatprep.subr.bf16.mxu0 0
    %904 = vmatpush1.bf16.msra.mxu0 %v887
    %905 = vmatprep.subr.bf16.mxu0 0
    %906 = vmatpush1.bf16.msra.mxu0 %v888
    %907 = vmatprep.subr.bf16.mxu0 0
    %908 = vmatpush1.bf16.msra.mxu0 %v889
    %909 = vmatprep.subr.bf16.mxu0 0
    %910 = vmatpush1.bf16.msra.mxu0 %v890
    %911 = vmatprep.subr.bf16.mxu0 0
    %912 = vmatpush1.bf16.msra.mxu0 %v891
    %913 = vmatprep.subr.bf16.mxu0 0
    %914 = vmatpush1.bf16.msra.mxu0 %v892
    %915 = vmatprep.subr.bf16.mxu0 0
    %916 = vmatpush1.bf16.msra.mxu0 %v893
    %917 = vmatprep.subr.bf16.mxu0 0
    %918 = vmatpush1.bf16.msra.mxu0 %v894
    %919 = vmatprep.subr.bf16.mxu0 0
    %920 = vmatpush1.bf16.msra.mxu0 0
    %921 = vmatprep.subr.bf16.mxu0 0
    %922 = vmatpush1.bf16.msra.mxu0 0
    %923 = vmatprep.subr.bf16.mxu0 0
    %924 = vmatpush1.bf16.msra.mxu0 0
    %925 = vmatprep.subr.bf16.mxu0 0
    %926 = vmatpush1.bf16.msra.mxu0 0
    %927 = vmatprep.subr.bf16.mxu0 0
    %928 = vmatpush1.bf16.msra.mxu0 0
    %929 = vmatprep.subr.bf16.mxu0 0
    %930 = vmatpush1.bf16.msra.mxu0 0
    %931 = vmatprep.subr.bf16.mxu0 0
    %932 = vmatpush1.bf16.msra.mxu0 0
    %933 = vmatprep.subr.bf16.mxu0 0
    %934 = vmatpush1.bf16.msra.mxu0 0
    %935 = vmatprep.mubr.bf16.mxu0 0
    %936 = vmatmul.mubr.bf16.gmra.mrb[0].mxu0 %v833
    %v937 = vpop.f32.mrb[0].mxu0
    %v938 = vadd.f32 %v854, %v937
    %v939 = vpop.f32.mrb[0].mxu0
    %v940 = vpop.f32.mrb[0].mxu0
    %v941 = vadd.f32 %v854, %v940
    %v942 = vpop.f32.mrb[0].mxu0
    %943 = vdwg.mxu0
    %v944 = vld [vmem:[%s4 + $0x1] sm:$0x1]
    %v945 = vld [vmem:[%s4 + $0x2] sm:$0x1]
    %v946 = vrot.slane %v938, 4
    %v947 = vadd.f32 %v938, %v946
    %v948 = vrot.slane %v947, 2
    %v949 = vadd.f32 %v947, %v948
    %v950 = vrot.slane %v949, 1
    %v951 = vadd.f32 %v949, %v950
    %v952 = vrcp.pop 8.0
    %v953 = vmul.f32 %v951, %v952
    %v954 = vsub.f32 %v938, %v953
    %v955 = vmul.f32 %v954, %v954
    %v956 = vrot.slane %v955, 4
    %v957 = vadd.f32 %v955, %v956
    %v958 = vrot.slane %v957, 2
    %v959 = vadd.f32 %v957, %v958
    %v960 = vrot.slane %v959, 1
    %v961 = vadd.f32 %v959, %v960
    %v962 = vmul.f32 %v961, %v952
    %v963 = vadd.f32 %v962, 1e-05
    %v964 = vrsqrt.pop %v963
    %v965 = vmul.f32 %v954, %v964
    %v966 = vrot.slane %v941, 4
    %v967 = vadd.f32 %v941, %v966
    %v968 = vrot.slane %v967, 2
    %v969 = vadd.f32 %v967, %v968
    %v970 = vrot.slane %v969, 1
    %v971 = vadd.f32 %v969, %v970
    %v972 = vmul.f32 %v971, %v952
    %v973 = vsub.f32 %v941, %v972
    %v974 = vmul.f32 %v973, %v973
    %v975 = vrot.slane %v974, 4
    %v976 = vadd.f32 %v974, %v975
    %v977 = vrot.slane %v976, 2
    %v978 = vadd.f32 %v976, %v977
    %v979 = vrot.slane %v978, 1
    %v980 = vadd.f32 %v978, %v979
    %v981 = vmul.f32 %v980, %v952
    %v982 = vadd.f32 %v981, 1e-05
    %v983 = vrsqrt.pop %v982
    %v984 = vmul.f32 %v973, %v983
    %v985 = vlaneseq
    %v986 = vshrl.u32 %v985, 7
    %v987 = vsub.s32 0, %v986
    %v988 = vrot.slane %v944, %v987
    %v989 = vmul.f32 %v965, %v988
    %v990 = vmul.f32 %v984, %v988
    %v991 = vlaneseq
    %v992 = vshrl.u32 %v991, 7
    %v993 = vsub.s32 0, %v992
    %v994 = vrot.slane %v945, %v993
    %v995 = vadd.f32 %v989, %v994
    %v996 = vadd.f32 %v990, %v994
    %v997 = vmax.f32 %v995, 0.0
    %v998 = vmax.f32 %v996, 0.0
    %v999 = vpack.c.bf16 %v998, %v997
    %v1000 = vld [vmem:[#allocation8] sm:$0xf]
    %v1001 = vld [vmem:[#allocation8 + $0x4] sm:$0xf]
    %v1002 = vld [vmem:[#allocation8 + $0x8] sm:$0xf]
    %v1003 = vld [vmem:[#allocation8 + $0xc] sm:$0xf]
    %v1004 = vld [vmem:[#allocation8 + $0x10] sm:$0xf]
    %v1005 = vld [vmem:[#allocation8 + $0x14] sm:$0xf]
    %v1006 = vld [vmem:[#allocation8 + $0x18] sm:$0xf]
    %v1007 = vld [vmem:[#allocation8 + $0x1c] sm:$0xf]
    %v1008 = vld [vmem:[#allocation8 + $0x20] sm:$0xf]
    %v1009 = vld [vmem:[#allocation8 + $0x24] sm:$0xf]
    %v1010 = vld [vmem:[#allocation8 + $0x28] sm:$0xf]
    %v1011 = vld [vmem:[#allocation8 + $0x2c] sm:$0xf]
    %v1012 = vld [vmem:[#allocation8 + $0x30] sm:$0xf]
    %v1013 = vld [vmem:[#allocation8 + $0x34] sm:$0xf]
    %v1014 = vld [vmem:[#allocation8 + $0x38] sm:$0xf]
    %v1015 = vld [vmem:[#allocation8 + $0x3c] sm:$0xf]
    %v1016 = vld [vmem:[%s6] sm:$0x1]
    %v1017 = vlaneseq
    %v1018 = vshrl.u32 %v1017, 7
    %v1019 = vsub.s32 0, %v1018
    %v1020 = vrot.slane %v1016, %v1019
    %v1037 = vunpack.c.l.b16 %v1000
    %v1038 = vunpack.c.l.b16 %v1001
    %v1039 = vunpack.c.l.b16 %v1002
    %v1040 = vunpack.c.l.b16 %v1003
    %v1041 = vunpack.c.l.b16 %v1004
    %v1042 = vunpack.c.l.b16 %v1005
    %v1043 = vunpack.c.l.b16 %v1006
    %v1044 = vunpack.c.l.b16 %v1007
    %v1045 = vunpack.c.l.b16 %v1008
    %v1046 = vunpack.c.l.b16 %v1009
    %v1047 = vunpack.c.l.b16 %v1010
    %v1048 = vunpack.c.l.b16 %v1011
    %v1049 = vunpack.c.l.b16 %v1012
    %v1050 = vunpack.c.l.b16 %v1013
    %v1051 = vunpack.c.l.b16 %v1014
    %v1052 = vunpack.c.l.b16 %v1015
    %v1053 = vpack.c.b16 %v1038, %v1037
    %v1054 = vpack.c.b16 %v1040, %v1039
    %v1055 = vpack.c.b16 %v1042, %v1041
    %v1056 = vpack.c.b16 %v1044, %v1043
    %v1057 = vpack.c.b16 %v1046, %v1045
    %v1058 = vpack.c.b16 %v1048, %v1047
    %v1059 = vpack.c.b16 %v1050, %v1049
    %v1060 = vpack.c.b16 %v1052, %v1051
    %1069 = vmatprep.subr.bf16.mxu0 0
    %1070 = vmatpush1.bf16.msra.mxu0 %v1053
    %1071 = vmatprep.subr.bf16.mxu0 0
    %1072 = vmatpush1.bf16.msra.mxu0 %v1054
    %1073 = vmatprep.subr.bf16.mxu0 0
    %1074 = vmatpush1.bf16.msra.mxu0 %v1055
    %1075 = vmatprep.subr.bf16.mxu0 0
    %1076 = vmatpush1.bf16.msra.mxu0 %v1056
    %1077 = vmatprep.subr.bf16.mxu0 0
    %1078 = vmatpush1.bf16.msra.mxu0 %v1057
    %1079 = vmatprep.subr.bf16.mxu0 0
    %1080 = vmatpush1.bf16.msra.mxu0 %v1058
    %1081 = vmatprep.subr.bf16.mxu0 0
    %1082 = vmatpush1.bf16.msra.mxu0 %v1059
    %1083 = vmatprep.subr.bf16.mxu0 0
    %1084 = vmatpush1.bf16.msra.mxu0 %v1060
    %1085 = vmatprep.subr.bf16.mxu0 0
    %1086 = vmatpush1.bf16.msra.mxu0 0
    %1087 = vmatprep.subr.bf16.mxu0 0
    %1088 = vmatpush1.bf16.msra.mxu0 0
    %1089 = vmatprep.subr.bf16.mxu0 0
    %1090 = vmatpush1.bf16.msra.mxu0 0
    %1091 = vmatprep.subr.bf16.mxu0 0
    %1092 = vmatpush1.bf16.msra.mxu0 0
    %1093 = vmatprep.subr.bf16.mxu0 0
    %1094 = vmatpush1.bf16.msra.mxu0 0
    %1095 = vmatprep.subr.bf16.mxu0 0
    %1096 = vmatpush1.bf16.msra.mxu0 0
    %1097 = vmatprep.subr.bf16.mxu0 0
    %1098 = vmatpush1.bf16.msra.mxu0 0
    %1099 = vmatprep.subr.bf16.mxu0 0
    %1100 = vmatpush1.bf16.msra.mxu0 0
    %1101 = vmatprep.mubr.bf16.mxu0 0
    %1102 = vmatmul.mubr.bf16.gmra.mrb[0].mxu0 %v999
    %v1103 = vpop.f32.mrb[0].mxu0
    %v1104 = vadd.f32 %v1020, %v1103
    %v1105 = vpop.f32.mrb[0].mxu0
    %v1106 = vpop.f32.mrb[0].mxu0
    %v1107 = vadd.f32 %v1020, %v1106
    %v1108 = vpop.f32.mrb[0].mxu0
    %1109 = vdwg.mxu0
    %v1110 = vld [vmem:[%s6 + $0x1] sm:$0x1]
    %v1111 = vld [vmem:[%s6 + $0x2] sm:$0x1]
    %v1112 = vrot.slane %v1104, 4
    %v1113 = vadd.f32 %v1104, %v1112
    %v1114 = vrot.slane %v1113, 2
    %v1115 = vadd.f32 %v1113, %v1114
    %v1116 = vrot.slane %v1115, 1
    %v1117 = vadd.f32 %v1115, %v1116
    %v1118 = vmul.f32 %v1117, %v952
    %v1119 = vsub.f32 %v1104, %v1118
    %v1120 = vmul.f32 %v1119, %v1119
    %v1121 = vrot.slane %v1120, 4
    %v1122 = vadd.f32 %v1120, %v1121
    %v1123 = vrot.slane %v1122, 2
    %v1124 = vadd.f32 %v1122, %v1123
    %v1125 = vrot.slane %v1124, 1
    %v1126 = vadd.f32 %v1124, %v1125
    %v1127 = vmul.f32 %v1126, %v952
    %v1128 = vadd.f32 %v1127, 1e-05
    %v1129 = vrsqrt.pop %v1128
    %v1130 = vmul.f32 %v1119, %v1129
    %v1131 = vrot.slane %v1107, 4
    %v1132 = vadd.f32 %v1107, %v1131
    %v1133 = vrot.slane %v1132, 2
    %v1134 = vadd.f32 %v1132, %v1133
    %v1135 = vrot.slane %v1134, 1
    %v1136 = vadd.f32 %v1134, %v1135
    %v1137 = vmul.f32 %v1136, %v952
    %v1138 = vsub.f32 %v1107, %v1137
    %v1139 = vmul.f32 %v1138, %v1138
    %v1140 = vrot.slane %v1139, 4
    %v1141 = vadd.f32 %v1139, %v1140
    %v1142 = vrot.slane %v1141, 2
    %v1143 = vadd.f32 %v1141, %v1142
    %v1144 = vrot.slane %v1143, 1
    %v1145 = vadd.f32 %v1143, %v1144
    %v1146 = vmul.f32 %v1145, %v952
    %v1147 = vadd.f32 %v1146, 1e-05
    %v1148 = vrsqrt.pop %v1147
    %v1149 = vmul.f32 %v1138, %v1148
    %v1150 = vlaneseq
    %v1151 = vshrl.u32 %v1150, 7
    %v1152 = vsub.s32 0, %v1151
    %v1153 = vrot.slane %v1110, %v1152
    %v1154 = vmul.f32 %v1130, %v1153
    %v1155 = vmul.f32 %v1149, %v1153
    %v1156 = vlaneseq
    %v1157 = vshrl.u32 %v1156, 7
    %v1158 = vsub.s32 0, %v1157
    %v1159 = vrot.slane %v1111, %v1158
    %v1160 = vadd.f32 %v1154, %v1159
    %v1161 = vadd.f32 %v1155, %v1159
    %v1162 = vmax.f32 %v1160, 0.0
    %v1163 = vmax.f32 %v1161, 0.0
    %v1164 = vpack.c.bf16 %v1163, %v1162
    %v1165 = vld [vmem:[#allocation10] sm:$0xf]
    %v1166 = vld [vmem:[#allocation10 + $0x4] sm:$0xf]
    %v1167 = vld [vmem:[#allocation10 + $0x8] sm:$0xf]
    %v1168 = vld [vmem:[#allocation10 + $0xc] sm:$0xf]
    %v1169 = vld [vmem:[#allocation10 + $0x10] sm:$0xf]
    %v1170 = vld [vmem:[#allocation10 + $0x14] sm:$0xf]
    %v1171 = vld [vmem:[#allocation10 + $0x18] sm:$0xf]
    %v1172 = vld [vmem:[#allocation10 + $0x1c] sm:$0xf]
    %v1173 = vld [vmem:[#allocation10 + $0x20] sm:$0xf]
    %v1174 = vld [vmem:[#allocation10 + $0x24] sm:$0xf]
    %v1175 = vld [vmem:[#allocation10 + $0x28] sm:$0xf]
    %v1176 = vld [vmem:[#allocation10 + $0x2c] sm:$0xf]
    %v1177 = vld [vmem:[#allocation10 + $0x30] sm:$0xf]
    %v1178 = vld [vmem:[#allocation10 + $0x34] sm:$0xf]
    %v1179 = vld [vmem:[#allocation10 + $0x38] sm:$0xf]
    %v1180 = vld [vmem:[#allocation10 + $0x3c] sm:$0xf]
    %v1181 = vld [vmem:[%s8] sm:$0x1]
    %v1183 = vlaneseq
    %v1184 = vshrl.u32 %v1183, 7
    %v1185 = vsub.s32 0, %v1184
    %v1186 = vrot.slane %v1181, %v1185
    %v1204 = vunpack.c.l.b16 %v1165
    %v1205 = vunpack.c.l.b16 %v1166
    %v1206 = vunpack.c.l.b16 %v1167
    %v1207 = vunpack.c.l.b16 %v1168
    %v1208 = vunpack.c.l.b16 %v1169
    %v1209 = vunpack.c.l.b16 %v1170
    %v1210 = vunpack.c.l.b16 %v1171
    %v1211 = vunpack.c.l.b16 %v1172
    %v1212 = vunpack.c.l.b16 %v1173
    %v1213 = vunpack.c.l.b16 %v1174
    %v1214 = vunpack.c.l.b16 %v1175
    %v1215 = vunpack.c.l.b16 %v1176
    %v1216 = vunpack.c.l.b16 %v1177
    %v1217 = vunpack.c.l.b16 %v1178
    %v1218 = vunpack.c.l.b16 %v1179
    %v1219 = vunpack.c.l.b16 %v1180
    %v1220 = vpack.c.b16 %v1205, %v1204
    %v1221 = vpack.c.b16 %v1207, %v1206
    %v1222 = vpack.c.b16 %v1209, %v1208
    %v1223 = vpack.c.b16 %v1211, %v1210
    %v1224 = vpack.c.b16 %v1213, %v1212
    %v1225 = vpack.c.b16 %v1215, %v1214
    %v1226 = vpack.c.b16 %v1217, %v1216
    %v1227 = vpack.c.b16 %v1219, %v1218
    %1236 = vmatprep.subr.bf16.mxu0 0
    %1237 = vmatpush1.bf16.msra.mxu0 %v1220
    %1238 = vmatprep.subr.bf16.mxu0 0
    %1239 = vmatpush1.bf16.msra.mxu0 %v1221
    %1240 = vmatprep.subr.bf16.mxu0 0
    %1241 = vmatpush1.bf16.msra.mxu0 %v1222
    %1242 = vmatprep.subr.bf16.mxu0 0
    %1243 = vmatpush1.bf16.msra.mxu0 %v1223
    %1244 = vmatprep.subr.bf16.mxu0 0
    %1245 = vmatpush1.bf16.msra.mxu0 %v1224
    %1246 = vmatprep.subr.bf16.mxu0 0
    %1247 = vmatpush1.bf16.msra.mxu0 %v1225
    %1248 = vmatprep.subr.bf16.mxu0 0
    %1249 = vmatpush1.bf16.msra.mxu0 %v1226
    %1250 = vmatprep.subr.bf16.mxu0 0
    %1251 = vmatpush1.bf16.msra.mxu0 %v1227
    %1252 = vmatprep.subr.bf16.mxu0 0
    %1253 = vmatpush1.bf16.msra.mxu0 0
    %1254 = vmatprep.subr.bf16.mxu0 0
    %1255 = vmatpush1.bf16.msra.mxu0 0
    %1256 = vmatprep.subr.bf16.mxu0 0
    %1257 = vmatpush1.bf16.msra.mxu0 0
    %1258 = vmatprep.subr.bf16.mxu0 0
    %1259 = vmatpush1.bf16.msra.mxu0 0
    %1260 = vmatprep.subr.bf16.mxu0 0
    %1261 = vmatpush1.bf16.msra.mxu0 0
    %1262 = vmatprep.subr.bf16.mxu0 0
    %1263 = vmatpush1.bf16.msra.mxu0 0
    %1264 = vmatprep.subr.bf16.mxu0 0
    %1265 = vmatpush1.bf16.msra.mxu0 0
    %1266 = vmatprep.subr.bf16.mxu0 0
    %1267 = vmatpush1.bf16.msra.mxu0 0
    %1268 = vmatprep.mubr.bf16.mxu0 0
    %1269 = vmatmul.mubr.bf16.gmra.mrb[0].mxu0 %v1164
    %v1270 = vpop.f32.mrb[0].mxu0
    %v1271 = vadd.f32 %v1186, %v1270
    %v1272 = vpop.f32.mrb[0].mxu0
    %v1273 = vpop.f32.mrb[0].mxu0
    %v1274 = vadd.f32 %v1186, %v1273
    %v1275 = vpop.f32.mrb[0].mxu0
    %1276 = vdwg.mxu0
    %1277 = vst [vmem:[#allocation11] sm:$0xff] %v1271
    %1278 = vst [vmem:[#allocation11 + $0x8] sm:$0xff] %v1274
    // Predicated region
    $region58: #{tpu_custom_call.1} parent=1 // pred_check
      _
    $region59: #{tpu_custom_call.1} parent=1 // pred_check_branch
      %1280 = sbr.rel (0) target = $region61
    $region60: #{tpu_custom_call.1} parent=1 // pred_region
      %s1282 = ssub.s32 256, 256
      %1283 = vsyncadd [#allocation4], %s1282
      %s1284 = sshll.u32 [#allocation11], 4
      %s1285 = int_to_ptr.vmem [resolvable:$true] %s1284
      %1290 = dma.vmem_to_hbm [thread:$0]  %s1285, 256, %s9, [#allocation4], 128, 128, 8
    $region61: #{tpu_custom_call.1} parent=1 // pred_fallthru
      _
    // Predicated region
    $region62: #{tpu_custom_call.1} parent=1 // pred_check
      _
    $region63: #{tpu_custom_call.1} parent=1 // pred_check_branch
      %1292 = sbr.rel (0) target = $region65
    $region64: #{tpu_custom_call.1} parent=1 // pred_region
      %1293 = dma.done [#allocation4], 256
    $region65: #{tpu_custom_call.1} parent=1 // pred_fallthru
      _
    %1294 = vsyncpa [#allocation3], 1
    %1295 = vsyncpa [#allocation6], 1
    %1296 = vsyncpa [#allocation9], 1
    %1297 = vsyncpa [#allocation4], 1

</llo_original>
